<compile_context>
chip_gen: v5e
topology: v5e:2x2
jax: 0.10.0
libtpu: 0.0.40
codegen_flags: <defaults>
</compile_context>

<pallas_src>
import math

import jax
import jax.numpy as jnp
from jax import lax
from jax.experimental import pallas as pl
from jax.experimental.pallas import tpu as pltpu

N_EMBD = 128          # C (matches nanoGPT_SH.py n_embd)
HEAD_SIZE = 32        # head_size passed to Head(...)
BLOCK_SIZE = 256      # tril buffer size in the PyTorch module (only [:T,:T] used)
LANE = 128            # vreg lane width; each head slot in w_kqv is padded to this


def _head_kernel(x_ref, w_ref, o_ref):
    # x_ref: (BB, T, C)   w_ref: (C, 3*LANE) bf16   o_ref: (BB, T, H)
    BB, T, C = x_ref.shape
    H = o_ref.shape[-1]

    # --- fused K/Q/V projection: one (BB*T, C) x (C, 3*128) MXU matmul -------
    x2 = x_ref[...].reshape(BB * T, C).astype(jnp.bfloat16)   # no-op if x is bf16
    kqv = jnp.dot(x2, w_ref[...], preferred_element_type=jnp.float32)
    kqv = kqv.reshape(BB, T, 3 * LANE)
    # lane-aligned, full-128-wide slices (zero-padded beyond H)
    k = kqv[:, :, 0 * LANE:1 * LANE].astype(jnp.bfloat16)
    q = kqv[:, :, 1 * LANE:2 * LANE].astype(jnp.bfloat16)     # C**-0.5 folded into W_q
    v = kqv[:, :, 2 * LANE:3 * LANE].astype(jnp.bfloat16)

    # --- attention scores: contraction on the (padded) head dim --------------
    wei = jnp.einsum('bqh,bkh->bqk', q, k,
                     preferred_element_type=jnp.float32)      # (BB, T, T)

    # --- softmax numerator in f32; causal mask as a post-exp select ----------
    m = jnp.max(wei, axis=-1, keepdims=True)   # full-row max is a valid stabilizer
    e = jnp.exp(wei - m)
    row = lax.broadcasted_iota(jnp.int32, (T, T), 0)
    col = lax.broadcasted_iota(jnp.int32, (T, T), 1)
    e = jnp.where((row >= col)[None, :, :], e, 0.0)
    s = jnp.sum(e, axis=-1, keepdims=True)                    # (BB, T, 1)

    # TODO(synk): nn.Dropout(0.2) is identity in eval mode; training-mode
    # dropout (with a PyTorch-matching RNG stream) is not reproduced here.

    # --- deferred normalization: (e @ v) scaled by 1/s on the (BB,T,H) result
    out = jnp.einsum('bqk,bkh->bqh', e.astype(jnp.bfloat16), v,
                     preferred_element_type=jnp.float32)      # (BB, T, 128)
    out = out[:, :, :H] * pl.reciprocal(s, approx=True)       # EUP reciprocal
    o_ref[...] = out.astype(o_ref.dtype)


def _pick_bb(B, T):
    """Batches per grid step.

    Largest divisor of B such that the (BB, T, T) f32 score/exp temps stay
    under ~2 MiB and the grid has >= 4 (preferably even) steps; degrades
    gracefully (even >= 2 steps, then any) for small B.
    """
    temp_budget = max(1, (2 * 1024 * 1024) // (T * T * 4))
    divisors = [d for d in range(1, B + 1) if B % d == 0]
    for min_steps, need_even in ((4, True), (4, False), (2, True), (2, False), (1, False)):
        cands = []
        for d in divisors:
            steps = B // d
            if d > temp_budget or steps < min_steps:
                continue
            if need_even and steps % 2 != 0:
                continue
            cands.append(d)
        if cands:
            return max(cands)
    return 1


def head_forward(x, w_key, w_query, w_value):
    """x: (B, T, C), f32 or bf16.  w_*: (head_size, C) f32 (PyTorch Linear layout)."""
    B, T, C = x.shape
    H = w_key.shape[0]
    assert C == N_EMBD and T <= BLOCK_SIZE and H <= LANE

    scale = C ** (-0.5)

    # Fused (C, 3*128) weight: each head block zero-padded to a full lane slot;
    # the softmax scale is folded into the query weight.
    def _pad(w):  # (H, C) -> (C, LANE)
        return jnp.pad(w.T, ((0, 0), (0, LANE - H)))

    w_kqv = jnp.concatenate(
        [_pad(w_key), _pad(w_query * scale), _pad(w_value)], axis=1
    ).astype(jnp.bfloat16)                                    # (C, 384)

    BB = _pick_bb(B, T)
    grid = (B // BB,)

    flops = (2 * B * T * C * (3 * LANE)        # fused projection
             + 2 * B * T * T * LANE            # scores
             + 2 * B * T * T * LANE)           # e @ v
    transcendentals = B * T * T
    bytes_accessed = (x.size * x.dtype.itemsize
                      + w_kqv.size * w_kqv.dtype.itemsize
                      + B * T * H * x.dtype.itemsize)

    return pl.pallas_call(
        _head_kernel,
        out_shape=jax.ShapeDtypeStruct((B, T, H), x.dtype),
        grid_spec=pltpu.PrefetchScalarGridSpec(
            num_scalar_prefetch=0,
            grid=grid,
            in_specs=[
                pl.BlockSpec((BB, T, C), lambda b: (b, 0, 0)),
                pl.BlockSpec((C, 3 * LANE), lambda b: (0, 0)),
            ],
            out_specs=pl.BlockSpec((BB, T, H), lambda b: (b, 0, 0)),
        ),
        compiler_params=pltpu.CompilerParams(
            dimension_semantics=("parallel",),
            vmem_limit_bytes=32 * 1024 * 1024,
        ),
        cost_estimate=pl.CostEstimate(
            flops=flops,
            transcendentals=transcendentals,
            bytes_accessed=bytes_accessed,
        ),
    )(x, w_kqv)


def head_reference(x, w_key, w_query, w_value):
    """Pure-JAX f32 reference matching the PyTorch forward (eval mode)."""
    B, T, C = x.shape
    k = x @ w_key.T
    q = x @ w_query.T
    v = x @ w_value.T
    wei = (q @ jnp.swapaxes(k, -2, -1)) * (C ** -0.5)
    mask = jnp.tril(jnp.ones((T, T), dtype=bool))
    wei = jnp.where(mask[None, :, :], wei, -jnp.inf)
    wei = jax.nn.softmax(wei, axis=-1)
    return wei @ v


if __name__ == "__main__":
    B, T, C, H = 2, 8, N_EMBD, HEAD_SIZE

    key = jax.random.PRNGKey(0)
    kx, kk, kq, kv = jax.random.split(key, 4)

    x = jax.random.normal(kx, (B, T, C), dtype=jnp.float32)
    # deterministic "Linear" weights, PyTorch layout (out_features, in_features)
    bound = 1.0 / math.sqrt(C)
    w_key_ = jax.random.uniform(kk, (H, C), jnp.float32, -bound, bound)
    w_query = jax.random.uniform(kq, (H, C), jnp.float32, -bound, bound)
    w_value = jax.random.uniform(kv, (H, C), jnp.float32, -bound, bound)

    out = head_forward(x, w_key_, w_query, w_value)
    out = jax.block_until_ready(out)

    ref = head_reference(x, w_key_, w_query, w_value)
    assert out.shape == (B, T, H)
    # bf16 MXU operands + approx reciprocal -> relaxed (but tight-for-bf16) tol
    assert jnp.allclose(out, ref, atol=3e-2, rtol=3e-2), "mismatch vs reference"

    print("KERNEL_OK")
</pallas_src>

<mosaic_0001>
module attributes {stable_mosaic.version = 11 : i64} {
  func.func @_head_kernel(%arg0: i32, %arg1: memref<1x8x128xf32, #tpu.memory_space<vmem>>, %arg2: memref<128x384xbf16, #tpu.memory_space<vmem>>, %arg3: memref<1x8x32xf32, #tpu.memory_space<vmem>>) attributes {dimension_semantics = [#tpu.dimension_semantics<parallel>], iteration_bounds = array<i64: 2>, scalar_prefetch = 0 : i64, scratch_operands = 0 : i64, tpu.core_type = #tpu.core_type<tc>, window_params = [{transform_indices = @transform_0, window_bounds = array<i64: 1, 8, 128>}, {pipeline_mode = #tpu.pipeline_mode<synchronous>, transform_indices = @transform_1, window_bounds = array<i64: 128, 384>}, {transform_indices = @transform_2, window_bounds = array<i64: 1, 8, 32>}]} {
    %c0 = arith.constant 0 : index
    %c0_0 = arith.constant 0 : index
    %c0_1 = arith.constant 0 : index
    %0 = vector.load %arg1[%c0, %c0_0, %c0_1] : memref<1x8x128xf32, #tpu.memory_space<vmem>>, vector<1x8x128xf32>
    %1 = vector.shape_cast %0 : vector<1x8x128xf32> to vector<8x128xf32>
    %2 = arith.truncf %1 : vector<8x128xf32> to vector<8x128xbf16>
    %c0_2 = arith.constant 0 : index
    %c0_3 = arith.constant 0 : index
    %3 = vector.load %arg2[%c0_2, %c0_3] : memref<128x384xbf16, #tpu.memory_space<vmem>>, vector<128x384xbf16>
    %cst = arith.constant dense<0.000000e+00> : vector<8x384xf32>
    %4 = tpu.matmul %2, %3, %cst {dimension_numbers = #tpu.dot_dimension_numbers<[1], [0], [0], [1], [0, 0, 1, 1], [], []>} : vector<8x128xbf16>, vector<128x384xbf16>, vector<8x384xf32> -> vector<8x384xf32>
    %5 = vector.shape_cast %4 : vector<8x384xf32> to vector<1x8x384xf32>
    %6 = vector.extract_strided_slice %5 {offsets = [0, 0, 0], sizes = [1, 8, 128], strides = [1, 1, 1]} : vector<1x8x384xf32> to vector<1x8x128xf32>
    %7 = arith.truncf %6 : vector<1x8x128xf32> to vector<1x8x128xbf16>
    %8 = vector.extract_strided_slice %5 {offsets = [0, 0, 128], sizes = [1, 8, 128], strides = [1, 1, 1]} : vector<1x8x384xf32> to vector<1x8x128xf32>
    %9 = arith.truncf %8 : vector<1x8x128xf32> to vector<1x8x128xbf16>
    %10 = vector.extract_strided_slice %5 {offsets = [0, 0, 256], sizes = [1, 8, 128], strides = [1, 1, 1]} : vector<1x8x384xf32> to vector<1x8x128xf32>
    %11 = arith.truncf %10 : vector<1x8x128xf32> to vector<1x8x128xbf16>
    "tpu.trace_start"() <{level = 10 : i32, message = "bqh,bkh->bqk"}> : () -> ()
    %cst_4 = arith.constant dense<0.000000e+00> : vector<1x8x8xf32>
    %12 = tpu.matmul %9, %7, %cst_4 {dimension_numbers = #tpu.dot_dimension_numbers<[2], [2], [1], [1], [0, 0, 0, 1, 1, 1], [0], [0]>} : vector<1x8x128xbf16>, vector<1x8x128xbf16>, vector<1x8x8xf32> -> vector<1x8x8xf32>
    "tpu.trace_stop"() : () -> ()
    %cst_5 = arith.constant dense<0xFF800000> : vector<1x8xf32>
    %13 = vector.multi_reduction <maximumf>, %12, %cst_5 [2] : vector<1x8x8xf32> to vector<1x8xf32>
    %14 = vector.shape_cast %13 : vector<1x8xf32> to vector<1x8x1xf32>
    %15 = vector.broadcast %14 : vector<1x8x1xf32> to vector<1x8x8xf32>
    %16 = arith.subf %12, %15 : vector<1x8x8xf32>
    %17 = math.exp %16 : vector<1x8x8xf32>
    %18 = tpu.iota {dimensions = array<i32: 0>} : vector<8x8xi32>
    %19 = tpu.iota {dimensions = array<i32: 1>} : vector<8x8xi32>
    %20 = arith.cmpi sge, %18, %19 : vector<8x8xi32>
    %21 = vector.shape_cast %20 : vector<8x8xi1> to vector<1x8x8xi1>
    %cst_6 = arith.constant 0.000000e+00 : f32
    %22 = vector.broadcast %cst_6 : f32 to vector<1x8x8xf32>
    %23 = arith.select %21, %17, %22 : vector<1x8x8xi1>, vector<1x8x8xf32>
    %cst_7 = arith.constant dense<0.000000e+00> : vector<1x8xf32>
    %24 = vector.multi_reduction <add>, %23, %cst_7 [2] : vector<1x8x8xf32> to vector<1x8xf32>
    %25 = vector.shape_cast %24 : vector<1x8xf32> to vector<1x8x1xf32>
    %26 = arith.truncf %23 : vector<1x8x8xf32> to vector<1x8x8xbf16>
    "tpu.trace_start"() <{level = 10 : i32, message = "bqk,bkh->bqh"}> : () -> ()
    %cst_8 = arith.constant dense<0.000000e+00> : vector<1x8x128xf32>
    %27 = tpu.matmul %26, %11, %cst_8 {dimension_numbers = #tpu.dot_dimension_numbers<[2], [1], [1], [2], [0, 0, 0, 1, 1, 2], [0], [0]>} : vector<1x8x8xbf16>, vector<1x8x128xbf16>, vector<1x8x128xf32> -> vector<1x8x128xf32>
    "tpu.trace_stop"() : () -> ()
    %28 = vector.extract_strided_slice %27 {offsets = [0, 0, 0], sizes = [1, 8, 32], strides = [1, 1, 1]} : vector<1x8x128xf32> to vector<1x8x32xf32>
    %29 = tpu.reciprocal %25 {approx = true} : vector<1x8x1xf32> -> vector<1x8x1xf32>
    %30 = vector.broadcast %29 : vector<1x8x1xf32> to vector<1x8x32xf32>
    %31 = arith.mulf %28, %30 : vector<1x8x32xf32>
    %c0_9 = arith.constant 0 : index
    %c0_10 = arith.constant 0 : index
    %c0_11 = arith.constant 0 : index
    %32 = vector.load %arg3[%c0_9, %c0_10, %c0_11] : memref<1x8x32xf32, #tpu.memory_space<vmem>>, vector<1x8x32xf32>
    tpu.vector_store %arg3[%c0_9, %c0_10, %c0_11], %31 {strides = array<i32>} : memref<1x8x32xf32, #tpu.memory_space<vmem>>, vector<1x8x32xf32>,
    return
  }
  func.func @transform_0(%arg0: i32) -> (i32, i32, i32) {
    %c0_i32 = arith.constant 0 : i32
    %c0_i32_0 = arith.constant 0 : i32
    %c0_i32_1 = arith.constant 0 : i32
    return %arg0, %c0_i32, %c0_i32_0 : i32, i32, i32
  }
  func.func @transform_1(%arg0: i32) -> (i32, i32) {
    %c0_i32 = arith.constant 0 : i32
    %c0_i32_0 = arith.constant 0 : i32
    %c0_i32_1 = arith.constant 0 : i32
    return %c0_i32, %c0_i32_0 : i32, i32
  }
  func.func @transform_2(%arg0: i32) -> (i32, i32, i32) {
    %c0_i32 = arith.constant 0 : i32
    %c0_i32_0 = arith.constant 0 : i32
    %c0_i32_1 = arith.constant 0 : i32
    return %arg0, %c0_i32, %c0_i32_0 : i32, i32, i32
  }
}

</mosaic_0001>

<llo_original>
// kernel: tpu_custom_call.1
$region0: #{tpu_custom_call.1}
  #allocation0 [shape = 'u32[]', space=smem, size = 0x4, offset = 0x4, fixed_abs, tag = 'smem constant byte address 0x4 - core index']
  #allocation1 [shape = 'u32[72,128]{1,0:T(1,128)}', space=vmem, size = 0x9000, scoped, tag = 'internal scratch']
  %s0 = inlined_call_operand.hbm [shape: f32[2,8,128], index: 0, kind: input, shape index: {}]
  %s1 = inlined_call_operand.hbm [shape: bf16[128,384], index: 1, kind: input, shape index: {}]
  %s2 = inlined_call_operand.hbm [shape: f32[2,8,32], index: 2, kind: output, shape index: {}]
  %s3 = sld [smem:[#allocation0]]
  $region49: #{tpu_custom_call.1} parent=0
    _
  %s5 = ssub.s32 1, %s3
  %s6 = scalar_select 0, %s5, %s3
  $region1: #{tpu_custom_call.1} parent=0
    #allocation2 [shape = 'u8[8192]{0}', space=vmem, size = 0x2000, scoped, tag = 'input window, operand 0']
    #allocation3 [shape = 's32[2]{0}', space=sflag, size = 0x8, scoped, tag = 'scoped memory for tpu_custom_call.1']
    #allocation4 [shape = 's32[2]{0}', space=sflag, size = 0x8, scoped, tag = 'scoped memory for tpu_custom_call.1']
    #allocation5 [shape = 'u8[98304]{0}', space=vmem, size = 0x18000, scoped, tag = 'input window, operand 1, single buffered']
    #allocation6 [shape = 's32[1]{0}', space=sflag, size = 0x4, scoped, tag = 'scoped memory for tpu_custom_call.1']
    #allocation7 [shape = 'u8[8192]{0}', space=vmem, size = 0x2000, scoped, tag = 'output window, operand 0']
    %7 = vsyncpa [#allocation3], 0
    %s8 = scalar_lea.sflag [#allocation3], 1
    %9 = vsyncpa %s8, 0
    %10 = vsyncpa [#allocation6], 0
    %11 = vsyncpa [#allocation4], 0
    %s12 = scalar_lea.sflag [#allocation4], 1
    %13 = vsyncpa %s12, 0
    loop: start=0, step=1, limit=4
    $region2: #{tpu_custom_call.1} parent=1 // loop_pre_header
      _
    $region3: #{tpu_custom_call.1} parent=1 // loop_header
      %s15 = sphi 0, %s19
      %p16 = scmp.ge.s32.totalorder %s15, 4
      %s25 = sphi 0, %s27
      %s28 = sphi 0, %s25
      %s29 = sphi 0, %s28
      %s45 = sphi 0, %s29
      %s49 = sphi 0, %s49
      %s51 = sphi 0, %s49
      %s52 = sphi 0, %s51
      %s66 = sphi 0, %s52
      %s72 = sphi 0, %s74
      %s75 = sphi 0, %s72
      %s76 = sphi 0, %s75
      %s92 = sphi 0, %s76
    $region4: #{tpu_custom_call.1} parent=1 // loop_header_branch
      %18 = sbr.rel (%p16) target = $region8
    $region5: #{tpu_custom_call.1} parent=1 // loop_body
      %s20 = ssub.s32 %s15, 1
      %s21 = ssub.s32 %s15, 2
      %s22 = sadd.s32 %s15, 1
      %s23 = ssub.s32 %s15, %s22
      %p24 = scmp.eq.s32.totalorder %s23, 0
      %s26 = sadd.s32 %s25, 1
      %s27 = scalar_select %p24, %s25, %s26
      %p30 = pneg %p24
      %p31 = scmp.eq.s32.totalorder %s15, 1
      %p32 = por %p30, %p31
      %p33 = scmp.ne.s32.totalorder %s25, %s28
      %p34 = scmp.eq.s32.totalorder %s15, 0
      %p35 = por %p33, %p34
      %p36 = scmp.ne.s32.totalorder %s25, %s28
      %p37 = scmp.eq.s32.totalorder %s20, 1
      %p38 = por %p36, %p37
      %p39 = scmp.ne.s32.totalorder %s28, %s29
      %p40 = scmp.eq.s32.totalorder %s20, 0
      %p41 = por %p39, %p40
      %p42 = scmp.ne.s32.totalorder %s28, %s29
      %p43 = scmp.eq.s32.totalorder %s21, 1
      %p44 = por %p42, %p43
      %p46 = scmp.ne.s32.totalorder %s29, %s45
      %p47 = scmp.eq.s32.totalorder %s21, 0
      %p48 = por %p46, %p47
      %s50 = sadd.s32 %s49, 1
      %p53 = scmp.eq.s32.totalorder %s15, 1
      %p54 = scmp.ne.s32.totalorder %s49, %s51
      %p55 = scmp.eq.s32.totalorder %s15, 0
      %p56 = por %p54, %p55
      %p57 = scmp.ne.s32.totalorder %s49, %s51
      %p58 = scmp.eq.s32.totalorder %s20, 1
      %p59 = por %p57, %p58
      %p60 = scmp.ne.s32.totalorder %s51, %s52
      %p61 = scmp.eq.s32.totalorder %s20, 0
      %p62 = por %p60, %p61
      %p63 = scmp.ne.s32.totalorder %s51, %s52
      %p64 = scmp.eq.s32.totalorder %s21, 1
      %p65 = por %p63, %p64
      %p67 = scmp.ne.s32.totalorder %s52, %s66
      %p68 = scmp.eq.s32.totalorder %s21, 0
      %p69 = por %p67, %p68
      %s70 = ssub.s32 %s15, %s22
      %p71 = scmp.eq.s32.totalorder %s70, 0
      %s73 = sadd.s32 %s72, 1
      %s74 = scalar_select %p71, %s72, %s73
      %p77 = pneg %p71
      %p78 = scmp.eq.s32.totalorder %s15, 1
      %p79 = por %p77, %p78
      %p80 = scmp.ne.s32.totalorder %s72, %s75
      %p81 = scmp.eq.s32.totalorder %s15, 0
      %p82 = por %p80, %p81
      %p83 = scmp.ne.s32.totalorder %s72, %s75
      %p84 = scmp.eq.s32.totalorder %s20, 1
      %p85 = por %p83, %p84
      %p86 = scmp.ne.s32.totalorder %s75, %s76
      %p87 = scmp.eq.s32.totalorder %s20, 0
      %p88 = por %p86, %p87
      %p89 = scmp.ne.s32.totalorder %s75, %s76
      %p90 = scmp.eq.s32.totalorder %s21, 1
      %p91 = por %p89, %p90
      %p93 = scmp.ne.s32.totalorder %s76, %s92
      %p94 = scmp.eq.s32.totalorder %s21, 0
      %p95 = por %p93, %p94
      %p96 = scmp.le.s32.totalorder 1, %s15
      %p97 = scmp.lt.s32.totalorder %s15, 3
      %p98 = pnand %p96, %p97
      %p99 = pneg %p98
      // Predicated region
      $region9: #{tpu_custom_call.1} parent=5 // pred_check
        _
      $region10: #{tpu_custom_call.1} parent=5 // pred_check_branch
        %101 = sbr.rel (%p98) target = $region12
      $region11: #{tpu_custom_call.1} parent=5 // pred_region
        %s102 = ssub.s32 %s15, 1
        // Predicated region
        $region13: #{tpu_custom_call.1} parent=11 // pred_check
          %p103 = pneg %p62
        $region14: #{tpu_custom_call.1} parent=11 // pred_check_branch
          %105 = sbr.rel (%p103) target = $region16
        $region15: #{tpu_custom_call.1} parent=11 // pred_region
          %107 = vsyncadd [#allocation6], 0
          %s108 = sshll.u32 %s1, 4
          %s109 = int_to_ptr.hbm [resolvable:$true] %s108
          %s110 = sshll.u32 [#allocation5], 4
          %s111 = int_to_ptr.vmem [resolvable:$true] %s110
          %116 = dma.hbm_to_vmem [thread:$0]  %s109, 3072, %s111, [#allocation6], 192, 192, 12
        $region16: #{tpu_custom_call.1} parent=11 // pred_fallthru
          _
      $region12: #{tpu_custom_call.1} parent=5 // pred_fallthru
        _
      %p117 = scmp.lt.s32.totalorder %s15, 2
      // Predicated region
      $region17: #{tpu_custom_call.1} parent=5 // pred_check
        %p118 = pneg %p117
      $region18: #{tpu_custom_call.1} parent=5 // pred_check_branch
        %120 = sbr.rel (%p118) target = $region20
      $region19: #{tpu_custom_call.1} parent=5 // pred_region
        // Predicated region
        $region21: #{tpu_custom_call.1} parent=19 // pred_check
          %p121 = pneg %p35
        $region22: #{tpu_custom_call.1} parent=19 // pred_check_branch
          %123 = sbr.rel (%p121) target = $region24
        $region23: #{tpu_custom_call.1} parent=19 // pred_region
          %s124 = sand.u32 %s25, 1
          %s125 = scalar_lea.sflag [#allocation3], %s124
          %s126 = sand.u32 %s25, 1
          %s127 = smul.addr %s126, 8
          %s128 = scalar_lea.vmem [#allocation2], %s127
          %130 = vsyncadd %s125, 0
          %s131 = smul.addr %s15, 8
          %s132 = scalar_lea.hbm %s0, %s131
          %s134 = sshll.u32 %s132, 4
          %s135 = int_to_ptr.hbm [resolvable:$true] %s134
          %s136 = sshll.u32 %s128, 4
          %s137 = int_to_ptr.vmem [resolvable:$true] %s136
          %139 = dma.hbm_to_vmem [thread:$0]  %s135, 128, %s137, %s125
        $region24: #{tpu_custom_call.1} parent=19 // pred_fallthru
          _
      $region20: #{tpu_custom_call.1} parent=5 // pred_fallthru
        _
      %p140 = scmp.le.s32.totalorder 1, %s15
      %p141 = scmp.lt.s32.totalorder %s15, 3
      %p142 = pnand %p140, %p141
      %p143 = pneg %p142
      // Predicated region
      $region25: #{tpu_custom_call.1} parent=5 // pred_check
        _
      $region26: #{tpu_custom_call.1} parent=5 // pred_check_branch
        %145 = sbr.rel (%p142) target = $region28
      $region27: #{tpu_custom_call.1} parent=5 // pred_region
        %s146 = ssub.s32 %s15, 1
        %s147 = sand.u32 %s28, 1
        %s148 = scalar_lea.sflag [#allocation3], %s147
        %s149 = sand.u32 %s28, 1
        %s150 = smul.addr %s149, 8
        %s151 = scalar_lea.vmem [#allocation2], %s150
        // Predicated region
        $region29: #{tpu_custom_call.1} parent=27 // pred_check
          %p152 = pneg %p41
        $region30: #{tpu_custom_call.1} parent=27 // pred_check_branch
          %154 = sbr.rel (%p152) target = $region32
        $region31: #{tpu_custom_call.1} parent=27 // pred_region
          %156 = dma.done %s148, 128
        $region32: #{tpu_custom_call.1} parent=27 // pred_fallthru
          _
        // Predicated region
        $region33: #{tpu_custom_call.1} parent=27 // pred_check
          %p157 = pneg %p62
        $region34: #{tpu_custom_call.1} parent=27 // pred_check_branch
          %159 = sbr.rel (%p157) target = $region36
        $region35: #{tpu_custom_call.1} parent=27 // pred_region
          %161 = dma.done [#allocation6], 3072
        $region36: #{tpu_custom_call.1} parent=27 // pred_fallthru
          _
        %s162 = sand.u32 %s28, 1
        %s163 = scalar_lea.sflag [#allocation3], %s162
        %s164 = sand.u32 %s28, 1
        %s165 = smul.addr %s164, 8
        %s166 = scalar_lea.vmem [#allocation2], %s165
        %p167 = pneg %p41
        %p168 = pneg %p38
        %p169 = pneg %p62
        %p170 = pneg %p59
        %p171 = pneg %p88
        %p172 = pneg %p85
        %s173 = sand.u32 %s75, 1
        %s174 = scalar_lea.sflag [#allocation4], %s173
        %s175 = sand.u32 %s75, 1
        %s176 = smul.addr %s175, 8
        %s177 = scalar_lea.vmem [#allocation7], %s176
        %v179 = vld [vmem:[%s151] sm:$0xff]
        %v180 = vpack.c.bf16 %v179, %v179
        %v181 = vld [vmem:[#allocation5] sm:$0xff]
        %v182 = vld [vmem:[#allocation5 + $0x8] sm:$0xf]
        %v183 = vld [vmem:[#allocation5 + $0xc] sm:$0xff]
        %v184 = vld [vmem:[#allocation5 + $0x14] sm:$0xf]
        %v185 = vld [vmem:[#allocation5 + $0x18] sm:$0xff]
        %v186 = vld [vmem:[#allocation5 + $0x20] sm:$0xf]
        %v187 = vld [vmem:[#allocation5 + $0x24] sm:$0xff]
        %v188 = vld [vmem:[#allocation5 + $0x2c] sm:$0xf]
        %v189 = vld [vmem:[#allocation5 + $0x30] sm:$0xff]
        %v190 = vld [vmem:[#allocation5 + $0x38] sm:$0xf]
        %v191 = vld [vmem:[#allocation5 + $0x3c] sm:$0xff]
        %v192 = vld [vmem:[#allocation5 + $0x44] sm:$0xf]
        %v193 = vld [vmem:[#allocation5 + $0x48] sm:$0xff]
        %v194 = vld [vmem:[#allocation5 + $0x50] sm:$0xf]
        %v195 = vld [vmem:[#allocation5 + $0x54] sm:$0xff]
        %v196 = vld [vmem:[#allocation5 + $0x5c] sm:$0xf]
        %v197 = vld [vmem:[#allocation5 + $0x60] sm:$0xff]
        %v198 = vld [vmem:[#allocation5 + $0x68] sm:$0xf]
        %v199 = vld [vmem:[#allocation5 + $0x6c] sm:$0xff]
        %v200 = vld [vmem:[#allocation5 + $0x74] sm:$0xf]
        %v201 = vld [vmem:[#allocation5 + $0x78] sm:$0xff]
        %v202 = vld [vmem:[#allocation5 + $0x80] sm:$0xf]
        %v203 = vld [vmem:[#allocation5 + $0x84] sm:$0xff]
        %v204 = vld [vmem:[#allocation5 + $0x8c] sm:$0xf]
        %v205 = vld [vmem:[#allocation5 + $0x90] sm:$0xff]
        %v206 = vld [vmem:[#allocation5 + $0x98] sm:$0xf]
        %v207 = vld [vmem:[#allocation5 + $0x9c] sm:$0xff]
        %v208 = vld [vmem:[#allocation5 + $0xa4] sm:$0xf]
        %v209 = vld [vmem:[#allocation5 + $0xa8] sm:$0xff]
        %v210 = vld [vmem:[#allocation5 + $0xb0] sm:$0xf]
        %v211 = vld [vmem:[#allocation5 + $0xb4] sm:$0xff]
        %v212 = vld [vmem:[#allocation5 + $0xbc] sm:$0xf]
        %v245 = vunpack.c.l.b16 %v181
        %v246 = vunpack.c.h.b16 %v181
        %v247 = vunpack.c.l.b16 %v182
        %v248 = vunpack.c.l.b16 %v183
        %v249 = vunpack.c.h.b16 %v183
        %v250 = vunpack.c.l.b16 %v184
        %v251 = vunpack.c.l.b16 %v185
        %v252 = vunpack.c.h.b16 %v185
        %v253 = vunpack.c.l.b16 %v186
        %v254 = vunpack.c.l.b16 %v187
        %v255 = vunpack.c.h.b16 %v187
        %v256 = vunpack.c.l.b16 %v188
        %v257 = vunpack.c.l.b16 %v189
        %v258 = vunpack.c.h.b16 %v189
        %v259 = vunpack.c.l.b16 %v190
        %v260 = vunpack.c.l.b16 %v191
        %v261 = vunpack.c.h.b16 %v191
        %v262 = vunpack.c.l.b16 %v192
        %v263 = vunpack.c.l.b16 %v193
        %v264 = vunpack.c.h.b16 %v193
        %v265 = vunpack.c.l.b16 %v194
        %v266 = vunpack.c.l.b16 %v195
        %v267 = vunpack.c.h.b16 %v195
        %v268 = vunpack.c.l.b16 %v196
        %v269 = vunpack.c.l.b16 %v197
        %v270 = vunpack.c.h.b16 %v197
        %v271 = vunpack.c.l.b16 %v198
        %v272 = vunpack.c.l.b16 %v199
        %v273 = vunpack.c.h.b16 %v199
        %v274 = vunpack.c.l.b16 %v200
        %v275 = vunpack.c.l.b16 %v201
        %v276 = vunpack.c.h.b16 %v201
        %v277 = vunpack.c.l.b16 %v202
        %v278 = vunpack.c.l.b16 %v203
        %v279 = vunpack.c.h.b16 %v203
        %v280 = vunpack.c.l.b16 %v204
        %v281 = vunpack.c.l.b16 %v205
        %v282 = vunpack.c.h.b16 %v205
        %v283 = vunpack.c.l.b16 %v206
        %v284 = vunpack.c.l.b16 %v207
        %v285 = vunpack.c.h.b16 %v207
        %v286 = vunpack.c.l.b16 %v208
        %v287 = vunpack.c.l.b16 %v209
        %v288 = vunpack.c.h.b16 %v209
        %v289 = vunpack.c.l.b16 %v210
        %v290 = vunpack.c.l.b16 %v211
        %v291 = vunpack.c.h.b16 %v211
        %v292 = vunpack.c.l.b16 %v212
        %v293 = vpack.c.b16 %v248, %v245
        %v294 = vpack.c.b16 %v249, %v246
        %v295 = vpack.c.b16 %v250, %v247
        %v296 = vpack.c.b16 %v254, %v251
        %v297 = vpack.c.b16 %v255, %v252
        %v298 = vpack.c.b16 %v256, %v253
        %v299 = vpack.c.b16 %v260, %v257
        %v300 = vpack.c.b16 %v261, %v258
        %v301 = vpack.c.b16 %v262, %v259
        %v302 = vpack.c.b16 %v266, %v263
        %v303 = vpack.c.b16 %v267, %v264
        %v304 = vpack.c.b16 %v268, %v265
        %v305 = vpack.c.b16 %v272, %v269
        %v306 = vpack.c.b16 %v273, %v270
        %v307 = vpack.c.b16 %v274, %v271
        %v308 = vpack.c.b16 %v278, %v275
        %v309 = vpack.c.b16 %v279, %v276
        %v310 = vpack.c.b16 %v280, %v277
        %v311 = vpack.c.b16 %v284, %v281
        %v312 = vpack.c.b16 %v285, %v282
        %v313 = vpack.c.b16 %v286, %v283
        %v314 = vpack.c.b16 %v290, %v287
        %v315 = vpack.c.b16 %v291, %v288
        %v316 = vpack.c.b16 %v292, %v289
        %341 = vmatpush.bf16.msra.mxu0 %v314
        %342 = vmatpush.bf16.msra.mxu0 %v311
        %343 = vmatpush.bf16.msra.mxu0 %v308
        %344 = vmatpush.bf16.msra.mxu0 %v305
        %345 = vmatpush.bf16.msra.mxu0 %v302
        %346 = vmatpush.bf16.msra.mxu0 %v299
        %347 = vmatpush.bf16.msra.mxu0 %v296
        %348 = vmatpush.bf16.msra.mxu0 %v293
        %349 = vmatmul.bf16.gmra.mxu0 %v180
        %v350 = vpop.f32.mrf.mxu0
        %v351 = vadd.f32 0.0, %v350
        %v352 = vpop.f32.mrf.mxu0
        %353 = vdwg.mxu0
        %354 = vmatpush.bf16.msra.mxu0 %v315
        %355 = vmatpush.bf16.msra.mxu0 %v312
        %356 = vmatpush.bf16.msra.mxu0 %v309
        %357 = vmatpush.bf16.msra.mxu0 %v306
        %358 = vmatpush.bf16.msra.mxu0 %v303
        %359 = vmatpush.bf16.msra.mxu0 %v300
        %360 = vmatpush.bf16.msra.mxu0 %v297
        %361 = vmatpush.bf16.msra.mxu0 %v294
        %362 = vmatmul.bf16.gmra.mxu0 %v180
        %v363 = vpop.f32.mrf.mxu0
        %v364 = vadd.f32 0.0, %v363
        %v365 = vpop.f32.mrf.mxu0
        %366 = vdwg.mxu0
        %367 = vmatpush.bf16.msra.mxu0 %v316
        %368 = vmatpush.bf16.msra.mxu0 %v313
        %369 = vmatpush.bf16.msra.mxu0 %v310
        %370 = vmatpush.bf16.msra.mxu0 %v307
        %371 = vmatpush.bf16.msra.mxu0 %v304
        %372 = vmatpush.bf16.msra.mxu0 %v301
        %373 = vmatpush.bf16.msra.mxu0 %v298
        %374 = vmatpush.bf16.msra.mxu0 %v295
        %375 = vmatmul.bf16.gmra.mxu0 %v180
        %v376 = vpop.f32.mrf.mxu0
        %v377 = vadd.f32 0.0, %v376
        %v378 = vpop.f32.mrf.mxu0
        %379 = vdwg.mxu0
        %v380 = vpack.c.bf16 %v351, %v351
        %v381 = vpack.c.bf16 %v364, %v364
        %v382 = vpack.c.bf16 %v377, %v377
        %383 = vmatpush.bf16.xpose.msra.mxu0 0
        %384 = vmatpush.bf16.xpose.msra.mxu0 0
        %385 = vmatpush.bf16.xpose.msra.mxu0 0
        %386 = vmatpush.bf16.xpose.msra.mxu0 0
        %387 = vmatpush.bf16.xpose.msra.mxu0 0
        %388 = vmatpush.bf16.xpose.msra.mxu0 0
        %389 = vmatpush.bf16.xpose.msra.mxu0 0
        %390 = vmatpush.bf16.xpose.msra.mxu0 %v380
        %391 = vmatmul.bf16.gmra.mxu0 %v381
        %v392 = vpop.f32.mrf.mxu0
        %v393 = vadd.f32 0.0, %v392
        %v394 = vpop.f32.mrf.mxu0
        %395 = vdwg.mxu0
        %vm396 = vcmask 64512
        %v397 = vsel %vm396, %v393, -inf
        %398 = vmax.xlane.f32.xlu0 %v397
        %v399 = vpop.xlane.xlu0 %398
        %v400 = vsub.f32 %v393, %v399
        %v401 = vmul.f32 %v400, 1.442695
        %v402 = vpow.pop %v401
        %v403 = vlaneseq
        %v404 = vshrl.u32 %v403, 7
        %v405 = vlaneseq
        %v406 = vand.u32 %v405, 127
        %vm407 = vcmp.ge.s32.totalorder %v404, %v406
        %v408 = vsel %vm407, %v402, 0.0
        %v409 = vsel %vm396, %v408, 0.0
        %410 = vadd.xlane.f32.xlu0 %v409
        %v411 = vpop.xlane.xlu0 %410
        %v412 = vpack.c.bf16 %v408, %v408
        %v414 = vsel %vm396, %v412, 0
        %vm416 = vcmask 1043456
        %v418 = vsel %vm416, %v382, 0
        %420 = vmatpush.bf16.msra.mxu0 0
        %421 = vmatpush.bf16.msra.mxu0 0
        %422 = vmatpush.bf16.msra.mxu0 0
        %423 = vmatpush.bf16.msra.mxu0 0
        %424 = vmatpush.bf16.msra.mxu0 0
        %425 = vmatpush.bf16.msra.mxu0 0
        %426 = vmatpush.bf16.msra.mxu0 0
        %427 = vmatpush.bf16.msra.mxu0 %v418
        %428 = vmatmul.bf16.gmra.mxu0 %v414
        %v429 = vpop.f32.mrf.mxu0
        %v430 = vadd.f32 0.0, %v429
        %v431 = vpop.f32.mrf.mxu0
        %432 = vdwg.mxu0
        %v433 = vrcp.pop %v411
        %v434 = vmul.f32 %v430, %v433
        %vm435 = vcmask 261120
        %436 = vst.msk [vmem:[%s177] sm:$0xff] %vm435, %v434
        %s437 = sand.u32 %s75, 1
        %s438 = scalar_lea.sflag [#allocation4], %s437
        %s439 = sand.u32 %s75, 1
        %s440 = smul.addr %s439, 8
        %s441 = scalar_lea.vmem [#allocation7], %s440
        // Predicated region
        $region37: #{tpu_custom_call.1} parent=27 // pred_check
          %p442 = pneg %p85
        $region38: #{tpu_custom_call.1} parent=27 // pred_check_branch
          %444 = sbr.rel (%p442) target = $region40
        $region39: #{tpu_custom_call.1} parent=27 // pred_region
          %446 = vsyncadd %s438, 0
          %s447 = smul.addr %s20, 8
          %s448 = scalar_lea.hbm %s2, %s447
          %s450 = sshll.u32 %s441, 4
          %s451 = int_to_ptr.vmem [resolvable:$true] %s450
          %s452 = sshll.u32 %s448, 4
          %s453 = int_to_ptr.hbm [resolvable:$true] %s452
          %455 = dma.vmem_to_hbm [thread:$0]  %s451, 128, %s453, %s438
        $region40: #{tpu_custom_call.1} parent=27 // pred_fallthru
          _
      $region28: #{tpu_custom_call.1} parent=5 // pred_fallthru
        _
      %p456 = scmp.le.s32.totalorder 2, %s15
      // Predicated region
      $region41: #{tpu_custom_call.1} parent=5 // pred_check
        %p457 = pneg %p456
      $region42: #{tpu_custom_call.1} parent=5 // pred_check_branch
        %459 = sbr.rel (%p457) target = $region44
      $region43: #{tpu_custom_call.1} parent=5 // pred_region
        %s460 = ssub.s32 %s15, 2
        // Predicated region
        $region45: #{tpu_custom_call.1} parent=43 // pred_check
          %p461 = pneg %p91
        $region46: #{tpu_custom_call.1} parent=43 // pred_check_branch
          %463 = sbr.rel (%p461) target = $region48
        $region47: #{tpu_custom_call.1} parent=43 // pred_region
          %s464 = sand.u32 %s76, 1
          %s465 = scalar_lea.sflag [#allocation4], %s464
          %s466 = sand.u32 %s76, 1
          %s467 = smul.addr %s466, 8
          %s468 = scalar_lea.vmem [#allocation7], %s467
          %470 = dma.done %s465, 128
        $region48: #{tpu_custom_call.1} parent=43 // pred_fallthru
          _
      $region44: #{tpu_custom_call.1} parent=5 // pred_fallthru
        _
    $region6: #{tpu_custom_call.1} parent=1 // loop_footer
      %s19 = sadd.s32 1, %s15
    $region7: #{tpu_custom_call.1} parent=1 // loop_footer_branch
      %14 = sbr.rel target = $region3
    $region8: #{tpu_custom_call.1} parent=1 // loop_exit
      _
    %471 = vsyncpa [#allocation3], 1
    %s472 = scalar_lea.sflag [#allocation3], 1
    %473 = vsyncpa %s472, 1
    %474 = vsyncpa [#allocation6], 1
    %475 = vsyncpa [#allocation4], 1
    %s476 = scalar_lea.sflag [#allocation4], 1
    %477 = vsyncpa %s476, 1

</llo_original>
